<compile_context>
chip_gen: v7x
topology: tpu7x:2x2x1
jax: 0.10.0
libtpu: 0.0.40
codegen_flags: <defaults>
</compile_context>

<pallas_src>
import functools

import jax
import jax.numpy as jnp
from jax.experimental import pallas as pl
from jax.experimental.pallas import tpu as pltpu


def _mse_kernel(y_ref, yhat_ref, out_ref, acc_ref, *,
                inv_batch, inner, nblocks, tm, lanes, acc_rows, rows,
                ragged, may_have_redundant):
    c = pl.program_id(0)          # core axis (CORE_PARALLEL on multi-TC chips)
    i = pl.program_id(1)          # reduction axis ("arbitrary")
    b = c * inner + i             # logical block index over rows

    @pl.when(i == 0)
    def _init():
        acc_ref[...] = jnp.zeros_like(acc_ref)

    def _accumulate(apply_mask):
        diff = yhat_ref[...].astype(jnp.float32) - y_ref[...].astype(jnp.float32)
        if apply_mask:
            # Zero-out rows past the true row count: partial edge blocks read
            # unspecified data out of bounds, so mask before accumulating.
            row_ids = jax.lax.broadcasted_iota(jnp.int32, (tm, lanes), 0) + b * tm
            diff = jnp.where(row_ids < rows, diff, 0.0)
        dsq = diff * diff
        # Fold row-chunks into the (smaller) resident accumulator: pure VPU
        # adds in vregs, fewer accumulator loads/stores than a full-tile acc.
        partial = dsq[0:acc_rows, :]
        for j in range(1, tm // acc_rows):
            partial = partial + dsq[j * acc_rows:(j + 1) * acc_rows, :]
        acc_ref[...] += partial

    full_blocks = nblocks - 1 if ragged else nblocks
    if (not ragged) and (not may_have_redundant):
        _accumulate(False)                      # common fast path, no gating
    else:
        if full_blocks > 0:
            @pl.when(b < full_blocks)
            def _full():
                _accumulate(False)
        if ragged:
            @pl.when(b == nblocks - 1)
            def _last():
                _accumulate(True)
        # blocks with b >= nblocks (redundant, clamped in the index_map) are
        # skipped entirely -> no double counting.

    @pl.when(i == pl.num_programs(1) - 1)
    def _finalize():
        # Single cross-lane/sublane reduce per core, then scale by 1/batch.
        out_ref[0, 0] = jnp.sum(acc_ref[...]) * jnp.float32(inv_batch)


def _chip_config():
    """(num_tensorcores_to_use, per-block element budget)."""
    kind = ""
    try:
        kind = jax.devices()[0].device_kind.lower()
    except Exception:
        pass
    multi_core = ("v7" in kind) or ("7x" in kind)     # v7x: 2 TCs, 3.2 TB/s HBM
    num_cores = 2 if multi_core else 1                # v5e/v6e: single TC
    block_elems = (1 << 20) if multi_core else (1 << 19)  # 4 MiB vs 2 MiB (f32)
    return num_cores, block_elems


def mse_loss(y: jax.Array, yhat: jax.Array) -> jax.Array:
    """sum((yhat - y)^2) / y.shape[0], computed in a Pallas TPU kernel."""
    assert y.shape == yhat.shape, "y and yhat must have the same shape"
    batch = y.shape[0]
    total = int(y.size)
    if total == 0:
        return jnp.float32(0.0)

    num_cores_hw, block_elems = _chip_config()

    itemsize = jnp.dtype(y.dtype).itemsize
    min_sub = {4: 8, 2: 16, 1: 32}.get(itemsize, 8)   # dtype min sublane tile

    yf = jnp.ravel(y)        # free reshape (contiguous)
    yhf = jnp.ravel(yhat)

    lanes = None
    for cand in (1024, 512, 256, 128):
        if total % cand == 0:
            lanes = cand
            break
    if lanes is None:
        # TODO(synk): element counts not a multiple of 128 fall back to a small
        # zero-pad copy (exact for MSE since padded diffs are 0); rare for NN
        # tensors and bounded at <128 extra elements.
        lanes = 128
        padded = -(-total // lanes) * lanes
        yf = jnp.pad(yf, (0, padded - total))
        yhf = jnp.pad(yhf, (0, padded - total))
        rows = padded // lanes
    else:
        rows = total // lanes

    y2 = yf.reshape(rows, lanes)      # zero-copy 2D lane-dense view
    yh2 = yhf.reshape(rows, lanes)

    budget_tm = max(min_sub, block_elems // lanes)

    if rows <= budget_tm:
        # Tiny/medium input: one block equal to the full array (full-dim block
        # shapes are always legal), single grid step, no masking, no core split.
        tm, nblocks, num_cores, inner = rows, 1, 1, 1
    else:
        tm = budget_tm                       # multiple of min_sub by construction
        nblocks = -(-rows // tm)
        num_cores = min(num_cores_hw, nblocks)
        inner = -(-nblocks // num_cores)

    ragged = (rows % tm) != 0
    may_have_redundant = (num_cores * inner) != nblocks

    acc_cap = max(8, (1 << 18) // lanes)     # <= 1 MiB f32 accumulator
    acc_rows = acc_cap if (tm > acc_cap and tm % acc_cap == 0) else tm

    kernel = functools.partial(
        _mse_kernel,
        inv_batch=1.0 / float(batch),
        inner=inner, nblocks=nblocks, tm=tm, lanes=lanes,
        acc_rows=acc_rows, rows=rows, ragged=ragged,
        may_have_redundant=may_have_redundant)

    if may_have_redundant:
        # Clamp redundant trailing blocks to a valid window; the kernel skips
        # their contribution via pl.when(b < nblocks).
        in_map = lambda c, i: (jnp.minimum(c * inner + i, nblocks - 1), 0)
    else:
        in_map = lambda c, i: (c * inner + i, 0)

    if num_cores == 2:
        dims = (pltpu.CORE_PARALLEL, pltpu.ARBITRARY)
    else:
        dims = (pltpu.ARBITRARY, pltpu.ARBITRARY)

    out = pl.pallas_call(
        kernel,
        out_shape=jax.ShapeDtypeStruct((num_cores, 1), jnp.float32),
        grid_spec=pltpu.PrefetchScalarGridSpec(
            num_scalar_prefetch=0,
            grid=(num_cores, inner),
            in_specs=[
                pl.BlockSpec((tm, lanes), in_map),
                pl.BlockSpec((tm, lanes), in_map),
            ],
            out_specs=pl.BlockSpec((1, 1), lambda c, i: (c, 0),
                                   memory_space=pltpu.SMEM),
            scratch_shapes=[pltpu.VMEM((acc_rows, lanes), jnp.float32)],
        ),
        compiler_params=pltpu.CompilerParams(
            dimension_semantics=dims,
            vmem_limit_bytes=32 * 1024 * 1024,
        ),
    )(y2, yh2)

    # Per-core partials are already scaled by 1/batch; sum them.
    return jnp.sum(out)


def mse_loss_ref(y, yhat):
    return jnp.sum((yhat - y) ** 2) / y.shape[0]


if __name__ == "__main__":
    key = jax.random.PRNGKey(0)
    k1, k2 = jax.random.split(key)
    # NCHW, small shapes: batch=2, channels=4, spatial=16
    y = jax.random.normal(k1, (2, 4, 16, 16), dtype=jnp.float32)
    yhat = jax.random.normal(k2, (2, 4, 16, 16), dtype=jnp.float32)

    loss = mse_loss(y, yhat)
    jax.block_until_ready(loss)

    ref = mse_loss_ref(y, yhat)
    assert jnp.allclose(loss, ref, rtol=1e-5, atol=1e-5), (loss, ref)
    print("KERNEL_OK")
</pallas_src>

<mosaic_0001>
module attributes {stable_mosaic.version = 11 : i64} {
  func.func @_mse_kernel(%arg0: i32, %arg1: i32, %arg2: memref<2x1024xf32, #tpu.memory_space<vmem>>, %arg3: memref<2x1024xf32, #tpu.memory_space<vmem>>, %arg4: memref<1x1xf32, #tpu.memory_space<smem>>, %arg5: memref<2x1024xf32, #tpu.memory_space<vmem>>) attributes {dimension_semantics = [#tpu.dimension_semantics<arbitrary>, #tpu.dimension_semantics<arbitrary>], iteration_bounds = array<i64: 1, 1>, scalar_prefetch = 0 : i64, scratch_operands = 1 : i64, tpu.core_type = #tpu.core_type<tc>, window_params = [{transform_indices = @transform_0, window_bounds = array<i64: 2, 1024>}, {transform_indices = @transform_1, window_bounds = array<i64: 2, 1024>}, {transform_indices = @transform_2, window_bounds = array<i64: 1, 1>}]} {
    %c0_i32 = arith.constant 0 : i32
    %0 = arith.cmpi eq, %arg1, %c0_i32 : i32
    %1 = arith.extui %0 : i1 to i32
    %c0_i32_0 = arith.constant 0 : i32
    %2 = arith.cmpi ne, %1, %c0_i32_0 : i32
    scf.if %2 {
      %cst = arith.constant 0.000000e+00 : f32
      %13 = vector.broadcast %cst : f32 to vector<2x1024xf32>
      %c0_10 = arith.constant 0 : index
      %c0_11 = arith.constant 0 : index
      %14 = vector.load %arg5[%c0_10, %c0_11] : memref<2x1024xf32, #tpu.memory_space<vmem>>, vector<2x1024xf32>
      tpu.vector_store %arg5[%c0_10, %c0_11], %13 {strides = array<i32>} : memref<2x1024xf32, #tpu.memory_space<vmem>>, vector<2x1024xf32>,
    } else {
    }
    %c0 = arith.constant 0 : index
    %c0_1 = arith.constant 0 : index
    %3 = vector.load %arg3[%c0, %c0_1] : memref<2x1024xf32, #tpu.memory_space<vmem>>, vector<2x1024xf32>
    %c0_2 = arith.constant 0 : index
    %c0_3 = arith.constant 0 : index
    %4 = vector.load %arg2[%c0_2, %c0_3] : memref<2x1024xf32, #tpu.memory_space<vmem>>, vector<2x1024xf32>
    %5 = arith.subf %3, %4 : vector<2x1024xf32>
    %6 = arith.mulf %5, %5 : vector<2x1024xf32>
    %c0_4 = arith.constant 0 : index
    %c0_5 = arith.constant 0 : index
    %7 = vector.load %arg5[%c0_4, %c0_5] : memref<2x1024xf32, #tpu.memory_space<vmem>>, vector<2x1024xf32>
    %8 = arith.addf %7, %6 : vector<2x1024xf32>
    %c0_6 = arith.constant 0 : index
    %c0_7 = arith.constant 0 : index
    %9 = vector.load %arg5[%c0_6, %c0_7] : memref<2x1024xf32, #tpu.memory_space<vmem>>, vector<2x1024xf32>
    tpu.vector_store %arg5[%c0_6, %c0_7], %8 {strides = array<i32>} : memref<2x1024xf32, #tpu.memory_space<vmem>>, vector<2x1024xf32>,
    %c0_i32_8 = arith.constant 0 : i32
    %10 = arith.cmpi eq, %arg1, %c0_i32_8 : i32
    %11 = arith.extui %10 : i1 to i32
    %c0_i32_9 = arith.constant 0 : i32
    %12 = arith.cmpi ne, %11, %c0_i32_9 : i32
    scf.if %12 {
      %c0_10 = arith.constant 0 : index
      %c0_11 = arith.constant 0 : index
      %13 = vector.load %arg5[%c0_10, %c0_11] : memref<2x1024xf32, #tpu.memory_space<vmem>>, vector<2x1024xf32>
      %14 = vector.shape_cast %13 : vector<2x1024xf32> to vector<1x2x1024xf32>
      %cst = arith.constant dense<0.000000e+00> : vector<1xf32>
      %15 = vector.multi_reduction <add>, %14, %cst [1, 2] : vector<1x2x1024xf32> to vector<1xf32>
      %16 = vector.shape_cast %15 : vector<1xf32> to vector<1x1x1xf32>
      %17 = vector.extract %16[0, 0, 0] : f32 from vector<1x1x1xf32>
      %cst_12 = arith.constant 5.000000e-01 : f32
      %18 = arith.mulf %17, %cst_12 : f32
      %c0_13 = arith.constant 0 : index
      %c0_14 = arith.constant 0 : index
      %19 = memref.load %arg4[%c0_13, %c0_14] : memref<1x1xf32, #tpu.memory_space<smem>>
      memref.store %18, %arg4[%c0_13, %c0_14] : memref<1x1xf32, #tpu.memory_space<smem>>
    } else {
    }
    return
  }
  func.func @transform_0(%arg0: i32, %arg1: i32) -> (i32, i32) {
    %c1_i32 = arith.constant 1 : i32
    %0 = arith.muli %arg0, %c1_i32 : i32
    %1 = arith.addi %0, %arg1 : i32
    %c0_i32 = arith.constant 0 : i32
    %c0_i32_0 = arith.constant 0 : i32
    return %1, %c0_i32 : i32, i32
  }
  func.func @transform_1(%arg0: i32, %arg1: i32) -> (i32, i32) {
    %c1_i32 = arith.constant 1 : i32
    %0 = arith.muli %arg0, %c1_i32 : i32
    %1 = arith.addi %0, %arg1 : i32
    %c0_i32 = arith.constant 0 : i32
    %c0_i32_0 = arith.constant 0 : i32
    return %1, %c0_i32 : i32, i32
  }
  func.func @transform_2(%arg0: i32, %arg1: i32) -> (i32, i32) {
    %c0_i32 = arith.constant 0 : i32
    %c0_i32_0 = arith.constant 0 : i32
    return %arg0, %c0_i32 : i32, i32
  }
}

</mosaic_0001>

<llo_original>
// kernel: tpu_custom_call.1
$region0: #{tpu_custom_call.1}
  #allocation0 [shape = 'u32[]', space=smem, size = 0x4, offset = 0x4, fixed_abs, tag = 'smem constant byte address 0x4 - core index']
  #allocation1 [shape = 'u32[144,128]{1,0:T(1,128)}', space=vmem, size = 0x12000, scoped, tag = 'internal scratch']
  #allocation2 [shape = 'f32[2,1024]{1,0:T(2,128)}', space=vmem, size = 0x2000, scoped, tag = 'scratch operand']
  %s0 = inlined_call_operand.hbm [shape: f32[2,1024], index: 0, kind: input, shape index: {}]
  %s1 = inlined_call_operand.hbm [shape: f32[2,1024], index: 1, kind: input, shape index: {}]
  %s2 = inlined_call_operand.hbm [shape: f32[1,1], index: 2, kind: output, shape index: {}]
  %s3 = sld [smem:[#allocation0]]
  $region34: #{tpu_custom_call.1} parent=0
    _
  %s5 = ssub.s32 1, %s3
  %s6 = scalar_select 0, %s5, %s3
  $region1: #{tpu_custom_call.1} parent=0
    #allocation3 [shape = 'u8[8192]{0}', space=vmem, size = 0x2000, scoped, tag = 'input window, operand 0, single buffered']
    #allocation4 [shape = 's32[1]{0}', space=sflag, size = 0x4, scoped, tag = 'scoped memory for tpu_custom_call.1']
    #allocation5 [shape = 's32[1]{0}', space=sflag, size = 0x4, scoped, tag = 'scoped memory for tpu_custom_call.1']
    #allocation6 [shape = 'u8[8192]{0}', space=vmem, size = 0x2000, scoped, tag = 'input window, operand 1, single buffered']
    #allocation7 [shape = 's32[1]{0}', space=sflag, size = 0x4, scoped, tag = 'scoped memory for tpu_custom_call.1']
    #allocation8 [shape = 'u8[512]{0}', space=smem, size = 0x200, scoped, tag = 'output window, operand 0, single buffered']
    %7 = vsyncpa [#allocation4], 0
    %8 = vsyncpa [#allocation7], 0
    %9 = vsyncpa [#allocation5], 0
    // Predicated region
    $region2: #{tpu_custom_call.1} parent=1 // pred_check
      _
    $region3: #{tpu_custom_call.1} parent=1 // pred_check_branch
      %11 = sbr.rel (0) target = $region5
    $region4: #{tpu_custom_call.1} parent=1 // pred_region
      %s12 = sadd.s32 0, 0
      %s14 = ssub.s32 256, 256
      %15 = vsyncadd [#allocation4], %s14
      %s16 = smul.addr %s12, 8
      %s17 = smul.addr %s16, 32
      %s18 = scalar_lea.hbm %s0, %s17
      %s20 = sshll.u32 [#allocation3], 4
      %s21 = int_to_ptr.vmem [resolvable:$true] %s20
      %23 = dma.hbm_to_vmem [thread:$0]  %s18, 256, %s21, [#allocation4]
    $region5: #{tpu_custom_call.1} parent=1 // pred_fallthru
      _
    // Predicated region
    $region6: #{tpu_custom_call.1} parent=1 // pred_check
      _
    $region7: #{tpu_custom_call.1} parent=1 // pred_check_branch
      %25 = sbr.rel (0) target = $region9
    $region8: #{tpu_custom_call.1} parent=1 // pred_region
      %s26 = sadd.s32 0, 0
      %s28 = ssub.s32 256, 256
      %29 = vsyncadd [#allocation7], %s28
      %s30 = smul.addr %s26, 8
      %s31 = smul.addr %s30, 32
      %s32 = scalar_lea.hbm %s1, %s31
      %s34 = sshll.u32 [#allocation6], 4
      %s35 = int_to_ptr.vmem [resolvable:$true] %s34
      %37 = dma.hbm_to_vmem [thread:$0]  %s32, 256, %s35, [#allocation7]
    $region9: #{tpu_custom_call.1} parent=1 // pred_fallthru
      _
    // Predicated region
    $region10: #{tpu_custom_call.1} parent=1 // pred_check
      _
    $region11: #{tpu_custom_call.1} parent=1 // pred_check_branch
      %39 = sbr.rel (0) target = $region13
    $region12: #{tpu_custom_call.1} parent=1 // pred_region
      %40 = dma.done [#allocation4], 256
    $region13: #{tpu_custom_call.1} parent=1 // pred_fallthru
      _
    // Predicated region
    $region14: #{tpu_custom_call.1} parent=1 // pred_check
      _
    $region15: #{tpu_custom_call.1} parent=1 // pred_check_branch
      %42 = sbr.rel (0) target = $region17
    $region16: #{tpu_custom_call.1} parent=1 // pred_region
      %43 = dma.done [#allocation7], 256
    $region17: #{tpu_custom_call.1} parent=1 // pred_fallthru
      _
    %s44 = sadd.s32 0, 0
    %s45 = sadd.s32 0, 0
    %p46 = scmp.eq.s32.totalorder 0, 0
    // Predicated region
    $region18: #{tpu_custom_call.1} parent=1 // pred_check
      %p47 = pneg %p46
    $region19: #{tpu_custom_call.1} parent=1 // pred_check_branch
      %49 = sbr.rel (%p47) target = $region21
    $region20: #{tpu_custom_call.1} parent=1 // pred_region
      %50 = vst [vmem:[#allocation2] sm:$0xff] 0.0
      %51 = vst [vmem:[#allocation2 + $0x8] sm:$0xff] 0.0
    $region21: #{tpu_custom_call.1} parent=1 // pred_fallthru
      _
    %v52 = vld [vmem:[#allocation6] sm:$0xff]
    %v53 = vld [vmem:[#allocation6 + $0x8] sm:$0xff]
    %v54 = vld [vmem:[#allocation3] sm:$0xff]
    %v55 = vld [vmem:[#allocation3 + $0x8] sm:$0xff]
    %v56 = vsub.f32 %v52, %v54
    %v57 = vsub.f32 %v53, %v55
    %v58 = vmul.f32 %v56, %v56
    %v59 = vmul.f32 %v57, %v57
    %v60 = vld [vmem:[#allocation2] sm:$0xff]
    %v61 = vld [vmem:[#allocation2 + $0x8] sm:$0xff]
    %v62 = vadd.f32 %v60, %v58
    %v63 = vadd.f32 %v61, %v59
    %64 = vst [vmem:[#allocation2] sm:$0xff] %v62
    %65 = vst [vmem:[#allocation2 + $0x8] sm:$0xff] %v63
    // Predicated region
    $region22: #{tpu_custom_call.1} parent=1 // pred_check
      %p66 = pneg %p46
    $region23: #{tpu_custom_call.1} parent=1 // pred_check_branch
      %68 = sbr.rel (%p66) target = $region25
    $region24: #{tpu_custom_call.1} parent=1 // pred_region
      %v69 = vld [vmem:[#allocation2] sm:$0xff]
      %v70 = vld [vmem:[#allocation2 + $0x8] sm:$0xff]
      %v73 = vcombine.high %v69, %v69
      %v75 = vunpack.c.l.s4 1983009808
      %v76 = vunpack.c.0.s8 %v75
      %v77 = vlaneseq
      %v78 = vshrl.u32 %v77, 7
      %v79 = vsub.s32 %v76, %v78
      %v80 = vrot.slane %v69, %v79
      %v82 = vunpack.c.l.s4 1983009808
      %v83 = vunpack.c.0.s8 %v82
      %v84 = vlaneseq
      %v85 = vshrl.u32 %v84, 7
      %v86 = vsub.s32 %v83, %v85
      %v87 = vrot.slane %v73, %v86
      %v88 = vcombine.high %v80, %v80
      %v89 = vcombine.high %v87, %v87
      %v90 = vcombine.high %v70, %v70
      %v92 = vunpack.c.l.s4 1983009808
      %v93 = vunpack.c.0.s8 %v92
      %v94 = vlaneseq
      %v95 = vshrl.u32 %v94, 7
      %v96 = vsub.s32 %v93, %v95
      %v97 = vrot.slane %v70, %v96
      %v99 = vunpack.c.l.s4 1983009808
      %v100 = vunpack.c.0.s8 %v99
      %v101 = vlaneseq
      %v102 = vshrl.u32 %v101, 7
      %v103 = vsub.s32 %v100, %v102
      %v104 = vrot.slane %v90, %v103
      %v105 = vcombine.high %v97, %v97
      %v106 = vcombine.high %v104, %v104
      %vm115 = vcmask 1041408
      %v116 = vsel %vm115, %v80, 0.0
      %v117 = vsel %vm115, %v88, 0.0
      %v118 = vadd.f32 %v116, %v117
      %v119 = vsel %vm115, %v87, 0.0
      %v120 = vadd.f32 %v118, %v119
      %v121 = vsel %vm115, %v89, 0.0
      %v122 = vadd.f32 %v120, %v121
      %v123 = vsel %vm115, %v97, 0.0
      %v124 = vadd.f32 %v122, %v123
      %v125 = vsel %vm115, %v105, 0.0
      %v126 = vadd.f32 %v124, %v125
      %v127 = vsel %vm115, %v104, 0.0
      %v128 = vadd.f32 %v126, %v127
      %v129 = vsel %vm115, %v106, 0.0
      %v130 = vadd.f32 %v128, %v129
      %131 = vadd.xlane.f32.xlu0 %v130
      %v132 = vpop.xlane.xlu0 %131
      %v133 = vrot.slane %v132, 4
      %v134 = vadd.f32 %v132, %v133
      %v135 = vrot.slane %v134, 2
      %v136 = vadd.f32 %v134, %v135
      %v137 = vrot.slane %v136, 1
      %v138 = vadd.f32 %v136, %v137
      %s139 = vtos %v138
      %s140 = smul.f32 %s139, 0.5
      %s141 = scalar_lea.smem [#allocation8], 0
      %142 = sst [smem:[%s141]] %s140
    $region25: #{tpu_custom_call.1} parent=1 // pred_fallthru
      _
    // Predicated region
    $region26: #{tpu_custom_call.1} parent=1 // pred_check
      _
    $region27: #{tpu_custom_call.1} parent=1 // pred_check_branch
      %144 = sbr.rel (0) target = $region29
    $region28: #{tpu_custom_call.1} parent=1 // pred_region
      %s146 = ssub.s32 16, 16
      %147 = vsyncadd [#allocation5], %s146
      %150 = dma.smem_to_hbm [#allocation8], 16, %s2, [#allocation5]
    $region29: #{tpu_custom_call.1} parent=1 // pred_fallthru
      _
    // Predicated region
    $region30: #{tpu_custom_call.1} parent=1 // pred_check
      _
    $region31: #{tpu_custom_call.1} parent=1 // pred_check_branch
      %152 = sbr.rel (0) target = $region33
    $region32: #{tpu_custom_call.1} parent=1 // pred_region
      %153 = dma.done [#allocation5], 16
    $region33: #{tpu_custom_call.1} parent=1 // pred_fallthru
      _
    %154 = sfence
    %155 = vsyncpa [#allocation4], 1
    %156 = vsyncpa [#allocation7], 1
    %157 = vsyncpa [#allocation5], 1

</llo_original>
